<compile_context>
chip_gen: v6e
topology: v6e:2x2x1
jax: 0.10.0
libtpu: 0.0.40
codegen_flags: <defaults>
</compile_context>

<pallas_src>
import functools

import jax
import jax.numpy as jnp
from jax import lax
from jax.experimental import pallas as pl
from jax.experimental.pallas import tpu as pltpu


# ---------------------------------------------------------------------------
# Kernels
# ---------------------------------------------------------------------------
def _masked_critic_kernel(lo_blk, valid_upto,
                          h_ref, w_ref, m_ref, out_ref, num_acc, den_acc):
    """Masked branch: value head + masked mean over the action window.

    h_ref : [bB, tS, H]  hidden tile (native dtype, e.g. bf16)
    w_ref : [H, 1]       value head weight (resident, same dtype as hidden)
    m_ref : [bB, tS, 1]  full-length zero-padded action mask tile (f32)
    out   : [bB, 1]      per-sequence value (f32)
    """
    s = pl.program_id(1)

    @pl.when(s == 0)
    def _():
        num_acc[...] = jnp.zeros_like(num_acc)
        den_acc[...] = jnp.zeros_like(den_acc)

    bB, tS, H = h_ref.shape
    # H -> 1 dot product on the MXU, f32 accumulation (inputs stay bf16/f32).
    h2 = h_ref[...].reshape(bB * tS, H)
    vals = jnp.dot(h2, w_ref[...], preferred_element_type=jnp.float32)  # [bB*tS, 1]
    vals = vals.reshape(bB, tS, 1)

    # Guard the ragged last block (positions >= array length hold padded
    # garbage for both hidden and mask).
    pos = (lo_blk + s) * tS + lax.broadcasted_iota(jnp.int32, (bB, tS, 1), 1)
    valid = pos < valid_upto

    m = m_ref[...]                                                       # f32
    num_acc[...] += jnp.sum(jnp.where(valid, vals * m, 0.0), axis=1)     # [bB, 1]
    den_acc[...] += jnp.sum(jnp.where(valid, m, 0.0), axis=1)            # [bB, 1]

    @pl.when(s == pl.num_programs(1) - 1)
    def _():
        # Clamp: all-zero mask rows give 0 instead of NaN (reference would NaN).
        den = jnp.maximum(den_acc[...], 1e-12)
        out_ref[...] = (num_acc[...] / den).astype(out_ref.dtype)


def _mean_critic_kernel(valid_upto, denom,
                        h_ref, w_ref, out_ref, num_acc):
    """No-mask branch: value head + plain mean over the first S-1 tokens."""
    s = pl.program_id(1)

    @pl.when(s == 0)
    def _():
        num_acc[...] = jnp.zeros_like(num_acc)

    bB, tS, H = h_ref.shape
    h2 = h_ref[...].reshape(bB * tS, H)
    vals = jnp.dot(h2, w_ref[...], preferred_element_type=jnp.float32)
    vals = vals.reshape(bB, tS, 1)

    pos = s * tS + lax.broadcasted_iota(jnp.int32, (bB, tS, 1), 1)
    valid = pos < valid_upto                                # excludes token S-1 + padding
    num_acc[...] += jnp.sum(jnp.where(valid, vals, 0.0), axis=1)

    @pl.when(s == pl.num_programs(1) - 1)
    def _():
        out_ref[...] = (num_acc[...] * (1.0 / denom)).astype(out_ref.dtype)


# ---------------------------------------------------------------------------
# Wrapper
# ---------------------------------------------------------------------------
def _choose_seq_tile(S, win, bB, H, itemsize, tile_budget_bytes=8 * 1024 * 1024):
    """Largest seq tile (multiple of 8) whose double-buffered hidden tile stays
    well under the default scoped-VMEM limit on v5e/v6e/v7x, without reading
    far past the needed window."""
    rows = tile_budget_bytes // max(1, bB * H * itemsize)
    rows = int(max(8, min(1024, rows)))
    rows -= rows % 8
    win8 = ((win + 7) // 8) * 8          # don't over-read a small window
    tS = min(rows, win8)
    if tS >= S:
        return S                         # single block == full seq axis (always legal)
    return tS


def critic_forward(last_hidden_state, value_head_w, action_mask=None):
    """JAX wrapper. Returns per-sequence value of shape [B] (float32)."""
    B, S, H = last_hidden_state.shape
    h_dtype = last_hidden_state.dtype
    itemsize = jnp.dtype(h_dtype).itemsize

    # Value head weight as an [H, 1] column in the hidden dtype (tiny cast).
    w_col = jnp.reshape(value_head_w, (H, 1)).astype(h_dtype)

    # Batch tile: multiple of 8 or the full batch (output BlockSpec constraint).
    bB = 8 if (B % 8 == 0 and B > 8) else B
    n_bblk = B // bB

    if action_mask is not None:
        A = action_mask.shape[1]
        if A > S - 1:
            raise ValueError(f"num_actions ({A}) must be <= seq_len - 1 ({S - 1})")
        lo, hi = S - 1 - A, S - 1                      # contributing positions [lo, hi)

        tS = _choose_seq_tile(S, A, bB, H, itemsize)
        lo_blk = lo // tS
        n_sblk = pl.cdiv(hi, tS) - lo_blk              # only blocks touching the window

        # Zero-pad the action mask to full seq length: window selection and
        # masked mean become one multiply; hidden is never copied in HBM.
        full_mask = jnp.pad(action_mask.astype(jnp.float32),
                            ((0, 0), (lo, S - hi))).reshape(B, S, 1)

        kernel = functools.partial(_masked_critic_kernel, lo_blk, S)
        out = pl.pallas_call(
            kernel,
            out_shape=jax.ShapeDtypeStruct((B, 1), jnp.float32),
            grid=(n_bblk, n_sblk),
            in_specs=[
                pl.BlockSpec((bB, tS, H), lambda b, s: (b, lo_blk + s, 0)),
                pl.BlockSpec((H, 1), lambda b, s: (0, 0)),        # weight stays resident
                pl.BlockSpec((bB, tS, 1), lambda b, s: (b, lo_blk + s, 0)),
            ],
            out_specs=pl.BlockSpec((bB, 1), lambda b, s: (b, 0)),
            scratch_shapes=[pltpu.VMEM((bB, 1), jnp.float32),
                            pltpu.VMEM((bB, 1), jnp.float32)],
            compiler_params=pltpu.CompilerParams(
                dimension_semantics=("parallel", "arbitrary")),
        )(last_hidden_state, w_col, full_mask)
    else:
        # TODO(synk): the reference's `.squeeze(1)` on the resulting 1-D tensor is a
        # PyTorch bug (IndexError); we return the mathematically intended mean.
        T = S - 1
        tS = _choose_seq_tile(S, T, bB, H, itemsize)
        n_sblk = pl.cdiv(T, tS)

        kernel = functools.partial(_mean_critic_kernel, T, float(T))
        out = pl.pallas_call(
            kernel,
            out_shape=jax.ShapeDtypeStruct((B, 1), jnp.float32),
            grid=(n_bblk, n_sblk),
            in_specs=[
                pl.BlockSpec((bB, tS, H), lambda b, s: (b, s, 0)),
                pl.BlockSpec((H, 1), lambda b, s: (0, 0)),
            ],
            out_specs=pl.BlockSpec((bB, 1), lambda b, s: (b, 0)),
            scratch_shapes=[pltpu.VMEM((bB, 1), jnp.float32)],
            compiler_params=pltpu.CompilerParams(
                dimension_semantics=("parallel", "arbitrary")),
        )(last_hidden_state, w_col)

    return out[:, 0]


def synthetic_backbone(sequences, embedding_table):
    # TODO(synk): `self.model` is an arbitrary transformer (untranslatable here);
    # a deterministic embedding lookup stands in to produce last_hidden_state.
    return jnp.take(embedding_table, sequences, axis=0)   # [B, S, H]


# ---------------------------------------------------------------------------
# Demo / correctness check
# ---------------------------------------------------------------------------
if __name__ == "__main__":
    B, S, H, A, V = 2, 8, 32, 4, 64

    key = jax.random.PRNGKey(0)
    k_emb, k_w, k_seq, k_mask = jax.random.split(key, 4)

    embedding = 0.02 * jax.random.normal(k_emb, (V, H), dtype=jnp.float32)
    # orthogonal init of a (1, H) weight == a unit-norm row vector.
    w_raw = jax.random.normal(k_w, (1, H), dtype=jnp.float32)
    value_head_w = w_raw / jnp.linalg.norm(w_raw)

    sequences = jax.random.randint(k_seq, (B, S), 0, V)
    action_mask = (jax.random.uniform(k_mask, (B, A)) > 0.3).astype(jnp.float32)
    action_mask = action_mask.at[:, 0].set(1.0)  # avoid all-zero rows

    last_hidden_f32 = synthetic_backbone(sequences, embedding)          # [B, S, H] f32
    last_hidden_bf16 = last_hidden_f32.astype(jnp.bfloat16)             # native backbone dtype

    # Pure-JAX reference.
    vals_ref = (last_hidden_f32 @ value_head_w.T)[..., 0][:, :-1]       # [B, S-1]
    ref_masked = ((vals_ref[:, -A:] * action_mask).sum(axis=1)
                  / action_mask.sum(axis=1))                            # [B]
    ref_nomask = vals_ref.mean(axis=1)                                  # [B]

    # f32 hidden, masked branch.
    value = jax.block_until_ready(
        critic_forward(last_hidden_f32, value_head_w, action_mask))
    assert value.shape == (B,)
    assert jnp.allclose(value, ref_masked, atol=1e-3, rtol=1e-3), (value, ref_masked)

    # f32 hidden, no-mask branch.
    v_nm = jax.block_until_ready(critic_forward(last_hidden_f32, value_head_w))
    assert jnp.allclose(v_nm, ref_nomask, atol=1e-3, rtol=1e-3), (v_nm, ref_nomask)

    # bf16-on-the-wire (no wrapper upcast), masked branch.
    v_bf16 = jax.block_until_ready(
        critic_forward(last_hidden_bf16, value_head_w, action_mask))
    assert jnp.allclose(v_bf16, ref_masked, atol=2e-2, rtol=2e-2), (v_bf16, ref_masked)

    print("KERNEL_OK")
</pallas_src>

<mosaic_0001>
module attributes {stable_mosaic.version = 11 : i64} {
  func.func @_masked_critic_kernel(%arg0: i32, %arg1: i32, %arg2: memref<2x8x32xf32, #tpu.memory_space<vmem>>, %arg3: memref<32x1xf32, #tpu.memory_space<vmem>>, %arg4: memref<2x8x1xf32, #tpu.memory_space<vmem>>, %arg5: memref<2x1xf32, #tpu.memory_space<vmem>>, %arg6: memref<2x1xf32, #tpu.memory_space<vmem>>, %arg7: memref<2x1xf32, #tpu.memory_space<vmem>>) attributes {dimension_semantics = [#tpu.dimension_semantics<parallel>, #tpu.dimension_semantics<arbitrary>], iteration_bounds = array<i64: 1, 1>, scalar_prefetch = 0 : i64, scratch_operands = 2 : i64, tpu.core_type = #tpu.core_type<tc>, window_params = [{transform_indices = @transform_0, window_bounds = array<i64: 2, 8, 32>}, {pipeline_mode = #tpu.pipeline_mode<synchronous>, transform_indices = @transform_1, window_bounds = array<i64: 32, 1>}, {transform_indices = @transform_2, window_bounds = array<i64: 2, 8, 1>}, {transform_indices = @transform_3, window_bounds = array<i64: 2, 1>}]} {
    %c0_i32 = arith.constant 0 : i32
    %0 = arith.cmpi eq, %arg1, %c0_i32 : i32
    %1 = arith.extui %0 : i1 to i32
    %c0_i32_0 = arith.constant 0 : i32
    %2 = arith.cmpi ne, %1, %c0_i32_0 : i32
    scf.if %2 {
      %cst_24 = arith.constant 0.000000e+00 : f32
      %32 = vector.broadcast %cst_24 : f32 to vector<2x1xf32>
      %c0_25 = arith.constant 0 : index
      %c0_26 = arith.constant 0 : index
      %33 = vector.load %arg6[%c0_25, %c0_26] : memref<2x1xf32, #tpu.memory_space<vmem>>, vector<2x1xf32>
      tpu.vector_store %arg6[%c0_25, %c0_26], %32 {strides = array<i32>} : memref<2x1xf32, #tpu.memory_space<vmem>>, vector<2x1xf32>,
      %cst_27 = arith.constant 0.000000e+00 : f32
      %34 = vector.broadcast %cst_27 : f32 to vector<2x1xf32>
      %c0_28 = arith.constant 0 : index
      %c0_29 = arith.constant 0 : index
      %35 = vector.load %arg7[%c0_28, %c0_29] : memref<2x1xf32, #tpu.memory_space<vmem>>, vector<2x1xf32>
      tpu.vector_store %arg7[%c0_28, %c0_29], %34 {strides = array<i32>} : memref<2x1xf32, #tpu.memory_space<vmem>>, vector<2x1xf32>,
    } else {
    }
    %c0 = arith.constant 0 : index
    %c0_1 = arith.constant 0 : index
    %c0_2 = arith.constant 0 : index
    %3 = vector.load %arg2[%c0, %c0_1, %c0_2] : memref<2x8x32xf32, #tpu.memory_space<vmem>>, vector<2x8x32xf32>
    %4 = vector.shape_cast %3 : vector<2x8x32xf32> to vector<16x32xf32>
    %c0_3 = arith.constant 0 : index
    %c0_4 = arith.constant 0 : index
    %5 = vector.load %arg3[%c0_3, %c0_4] : memref<32x1xf32, #tpu.memory_space<vmem>>, vector<32x1xf32>
    %cst = arith.constant dense<0.000000e+00> : vector<16x1xf32>
    %6 = tpu.matmul %4, %5, %cst {dimension_numbers = #tpu.dot_dimension_numbers<[1], [0], [0], [1], [0, 0, 1, 1], [], []>} : vector<16x32xf32>, vector<32x1xf32>, vector<16x1xf32> -> vector<16x1xf32>
    %7 = vector.shape_cast %6 : vector<16x1xf32> to vector<2x8x1xf32>
    %c0_i32_5 = arith.constant 0 : i32
    %8 = arith.addi %c0_i32_5, %arg1 : i32
    %c8_i32 = arith.constant 8 : i32
    %9 = arith.muli %8, %c8_i32 : i32
    %10 = tpu.iota {dimensions = array<i32: 1>} : vector<2x8x1xi32>
    %11 = vector.broadcast %9 : i32 to vector<2x8x1xi32>
    %12 = arith.addi %11, %10 : vector<2x8x1xi32>
    %c8_i32_6 = arith.constant 8 : i32
    %13 = vector.broadcast %c8_i32_6 : i32 to vector<2x8x1xi32>
    %14 = arith.cmpi slt, %12, %13 : vector<2x8x1xi32>
    %c0_7 = arith.constant 0 : index
    %c0_8 = arith.constant 0 : index
    %c0_9 = arith.constant 0 : index
    %15 = vector.load %arg4[%c0_7, %c0_8, %c0_9] : memref<2x8x1xf32, #tpu.memory_space<vmem>>, vector<2x8x1xf32>
    %c0_10 = arith.constant 0 : index
    %c0_11 = arith.constant 0 : index
    %16 = vector.load %arg6[%c0_10, %c0_11] : memref<2x1xf32, #tpu.memory_space<vmem>>, vector<2x1xf32>
    %17 = arith.mulf %7, %15 : vector<2x8x1xf32>
    %cst_12 = arith.constant 0.000000e+00 : f32
    %18 = vector.broadcast %cst_12 : f32 to vector<2x8x1xf32>
    %19 = arith.select %14, %17, %18 : vector<2x8x1xi1>, vector<2x8x1xf32>
    %cst_13 = arith.constant dense<0.000000e+00> : vector<2x1xf32>
    %20 = vector.multi_reduction <add>, %19, %cst_13 [1] : vector<2x8x1xf32> to vector<2x1xf32>
    %21 = arith.addf %16, %20 : vector<2x1xf32>
    %c0_14 = arith.constant 0 : index
    %c0_15 = arith.constant 0 : index
    %22 = vector.load %arg6[%c0_14, %c0_15] : memref<2x1xf32, #tpu.memory_space<vmem>>, vector<2x1xf32>
    tpu.vector_store %arg6[%c0_14, %c0_15], %21 {strides = array<i32>} : memref<2x1xf32, #tpu.memory_space<vmem>>, vector<2x1xf32>,
    %c0_16 = arith.constant 0 : index
    %c0_17 = arith.constant 0 : index
    %23 = vector.load %arg7[%c0_16, %c0_17] : memref<2x1xf32, #tpu.memory_space<vmem>>, vector<2x1xf32>
    %cst_18 = arith.constant 0.000000e+00 : f32
    %24 = vector.broadcast %cst_18 : f32 to vector<2x8x1xf32>
    %25 = arith.select %14, %15, %24 : vector<2x8x1xi1>, vector<2x8x1xf32>
    %cst_19 = arith.constant dense<0.000000e+00> : vector<2x1xf32>
    %26 = vector.multi_reduction <add>, %25, %cst_19 [1] : vector<2x8x1xf32> to vector<2x1xf32>
    %27 = arith.addf %23, %26 : vector<2x1xf32>
    %c0_20 = arith.constant 0 : index
    %c0_21 = arith.constant 0 : index
    %28 = vector.load %arg7[%c0_20, %c0_21] : memref<2x1xf32, #tpu.memory_space<vmem>>, vector<2x1xf32>
    tpu.vector_store %arg7[%c0_20, %c0_21], %27 {strides = array<i32>} : memref<2x1xf32, #tpu.memory_space<vmem>>, vector<2x1xf32>,
    %c0_i32_22 = arith.constant 0 : i32
    %29 = arith.cmpi eq, %arg1, %c0_i32_22 : i32
    %30 = arith.extui %29 : i1 to i32
    %c0_i32_23 = arith.constant 0 : i32
    %31 = arith.cmpi ne, %30, %c0_i32_23 : i32
    scf.if %31 {
      %c0_24 = arith.constant 0 : index
      %c0_25 = arith.constant 0 : index
      %32 = vector.load %arg7[%c0_24, %c0_25] : memref<2x1xf32, #tpu.memory_space<vmem>>, vector<2x1xf32>
      %cst_26 = arith.constant 9.99999996E-13 : f32
      %33 = vector.broadcast %cst_26 : f32 to vector<2x1xf32>
      %34 = arith.maximumf %32, %33 : vector<2x1xf32>
      %c0_27 = arith.constant 0 : index
      %c0_28 = arith.constant 0 : index
      %35 = vector.load %arg6[%c0_27, %c0_28] : memref<2x1xf32, #tpu.memory_space<vmem>>, vector<2x1xf32>
      %36 = arith.divf %35, %34 : vector<2x1xf32>
      %c0_29 = arith.constant 0 : index
      %c0_30 = arith.constant 0 : index
      %37 = vector.load %arg5[%c0_29, %c0_30] : memref<2x1xf32, #tpu.memory_space<vmem>>, vector<2x1xf32>
      tpu.vector_store %arg5[%c0_29, %c0_30], %36 {strides = array<i32>} : memref<2x1xf32, #tpu.memory_space<vmem>>, vector<2x1xf32>,
    } else {
    }
    return
  }
  func.func @transform_0(%arg0: i32, %arg1: i32) -> (i32, i32, i32) {
    %c0_i32 = arith.constant 0 : i32
    %0 = arith.addi %c0_i32, %arg1 : i32
    %c0_i32_0 = arith.constant 0 : i32
    %c0_i32_1 = arith.constant 0 : i32
    return %arg0, %0, %c0_i32_0 : i32, i32, i32
  }
  func.func @transform_1(%arg0: i32, %arg1: i32) -> (i32, i32) {
    %c0_i32 = arith.constant 0 : i32
    %c0_i32_0 = arith.constant 0 : i32
    %c0_i32_1 = arith.constant 0 : i32
    return %c0_i32, %c0_i32_0 : i32, i32
  }
  func.func @transform_2(%arg0: i32, %arg1: i32) -> (i32, i32, i32) {
    %c0_i32 = arith.constant 0 : i32
    %0 = arith.addi %c0_i32, %arg1 : i32
    %c0_i32_0 = arith.constant 0 : i32
    %c0_i32_1 = arith.constant 0 : i32
    return %arg0, %0, %c0_i32_0 : i32, i32, i32
  }
  func.func @transform_3(%arg0: i32, %arg1: i32) -> (i32, i32) {
    %c0_i32 = arith.constant 0 : i32
    %c0_i32_0 = arith.constant 0 : i32
    return %arg0, %c0_i32 : i32, i32
  }
}

</mosaic_0001>

<llo_original>
// kernel: tpu_custom_call.1
$region0: #{tpu_custom_call.1}
  #allocation0 [shape = 'u32[]', space=smem, size = 0x4, offset = 0x4, fixed_abs, tag = 'smem constant byte address 0x4 - core index']
  #allocation1 [shape = 'u32[144,128]{1,0:T(1,128)}', space=vmem, size = 0x12000, scoped, tag = 'internal scratch']
  #allocation2 [shape = 'f32[2,1]{1,0:T(2,128)}', space=vmem, size = 0x400, scoped, tag = 'scratch operand']
  #allocation3 [shape = 'f32[2,1]{1,0:T(2,128)}', space=vmem, size = 0x400, scoped, tag = 'scratch operand']
  %s0 = inlined_call_operand.vmem [shape: f32[2,8,32], index: 0, kind: input, shape index: {}]
  %s1 = inlined_call_operand.vmem [shape: f32[32,1], index: 1, kind: input, shape index: {}]
  %s2 = inlined_call_operand.vmem [shape: f32[2,8,1], index: 2, kind: input, shape index: {}]
  %s3 = inlined_call_operand.vmem [shape: f32[2,1], index: 3, kind: output, shape index: {}]
  %s4 = sld [smem:[#allocation0]]
  $region30: #{tpu_custom_call.1} parent=0
    _
  %s6 = ssub.s32 1, %s4
  %s7 = scalar_select 0, %s6, %s4
  // Predicated region
  $region2: #{tpu_custom_call.1} parent=0 // pred_check
    _
  $region3: #{tpu_custom_call.1} parent=0 // pred_check_branch
    %9 = sbr.rel (0) target = $region5
  $region4: #{tpu_custom_call.1} parent=0 // pred_region
    _
  $region5: #{tpu_custom_call.1} parent=0 // pred_fallthru
    _
  // Predicated region
  $region6: #{tpu_custom_call.1} parent=0 // pred_check
    _
  $region7: #{tpu_custom_call.1} parent=0 // pred_check_branch
    %11 = sbr.rel (0) target = $region9
  $region8: #{tpu_custom_call.1} parent=0 // pred_region
    _
  $region9: #{tpu_custom_call.1} parent=0 // pred_fallthru
    _
  // Predicated region
  $region10: #{tpu_custom_call.1} parent=0 // pred_check
    _
  $region11: #{tpu_custom_call.1} parent=0 // pred_check_branch
    %13 = sbr.rel (0) target = $region13
  $region12: #{tpu_custom_call.1} parent=0 // pred_region
    _
  $region13: #{tpu_custom_call.1} parent=0 // pred_fallthru
    _
  %p14 = scmp.eq.s32.totalorder 0, 0
  // Predicated region
  $region14: #{tpu_custom_call.1} parent=0 // pred_check
    %p15 = pneg %p14
  $region15: #{tpu_custom_call.1} parent=0 // pred_check_branch
    %17 = sbr.rel (%p15) target = $region17
  $region16: #{tpu_custom_call.1} parent=0 // pred_region
    %vm18 = vcmask 1024
    %19 = vst.msk [vmem:[#allocation2] sm:$0x3] %vm18, 0.0
    %20 = vst.msk [vmem:[#allocation3] sm:$0x3] %vm18, 0.0
  $region17: #{tpu_custom_call.1} parent=0 // pred_fallthru
    _
  %v21 = vld [vmem:[%s0] sm:$0xff]
  %v22 = vld [vmem:[%s0 + $0x8] sm:$0xff]
  %v23 = vld [vmem:[%s1] sm:$0xff]
  %v24 = vld [vmem:[%s1 + $0x8] sm:$0xff]
  %v25 = vld [vmem:[%s1 + $0x10] sm:$0xff]
  %v26 = vld [vmem:[%s1 + $0x18] sm:$0xff]
  %vm27 = vcmask 261120
  %v29 = vsel %vm27, %v21, 0
  %v32 = vsel %vm27, %v22, 0
  %34 = vmatprep.subr.mxu0 0.0
  %35 = vmatpush1.msra.mxu0 0.0
  %36 = vmatprep.subr.mxu0 0.0
  %37 = vmatpush1.msra.mxu0 0.0
  %38 = vmatprep.subr.mxu0 0.0
  %39 = vmatpush1.msra.mxu0 0.0
  %40 = vmatprep.subr.mxu0 0.0
  %41 = vmatpush1.msra.mxu0 0.0
  %42 = vmatprep.subr.mxu0 0.0
  %43 = vmatpush1.msra.mxu0 0.0
  %44 = vmatprep.subr.mxu0 0.0
  %45 = vmatpush1.msra.mxu0 0.0
  %46 = vmatprep.subr.mxu0 0.0
  %47 = vmatpush1.msra.mxu0 0.0
  %48 = vmatprep.subr.mxu0 0.0
  %49 = vmatpush1.msra.mxu0 0.0
  %50 = vmatprep.subr.mxu0 0.0
  %51 = vmatpush1.msra.mxu0 0.0
  %52 = vmatprep.subr.mxu0 0.0
  %53 = vmatpush1.msra.mxu0 0.0
  %54 = vmatprep.subr.mxu0 0.0
  %55 = vmatpush1.msra.mxu0 0.0
  %56 = vmatprep.subr.mxu0 0.0
  %57 = vmatpush1.msra.mxu0 0.0
  %58 = vmatprep.subr.mxu0 0.0
  %59 = vmatpush1.msra.mxu0 %v26
  %60 = vmatprep.subr.mxu0 0.0
  %61 = vmatpush1.msra.mxu0 %v25
  %62 = vmatprep.subr.mxu0 0.0
  %63 = vmatpush1.msra.mxu0 %v24
  %64 = vmatprep.subr.mxu0 0.0
  %65 = vmatpush1.msra.mxu0 %v23
  %66 = vmatprep.subr.mxu0 0.0
  %67 = vmatpush2.msra.mxu0 0.0
  %68 = vmatprep.subr.mxu0 0.0
  %69 = vmatpush2.msra.mxu0 0.0
  %70 = vmatprep.subr.mxu0 0.0
  %71 = vmatpush2.msra.mxu0 0.0
  %72 = vmatprep.subr.mxu0 0.0
  %73 = vmatpush2.msra.mxu0 0.0
  %74 = vmatprep.subr.mxu0 0.0
  %75 = vmatpush2.msra.mxu0 0.0
  %76 = vmatprep.subr.mxu0 0.0
  %77 = vmatpush2.msra.mxu0 0.0
  %78 = vmatprep.subr.mxu0 0.0
  %79 = vmatpush2.msra.mxu0 0.0
  %80 = vmatprep.subr.mxu0 0.0
  %81 = vmatpush2.msra.mxu0 0.0
  %82 = vmatprep.subr.mxu0 0.0
  %83 = vmatpush2.msra.mxu0 0.0
  %84 = vmatprep.subr.mxu0 0.0
  %85 = vmatpush2.msra.mxu0 0.0
  %86 = vmatprep.subr.mxu0 0.0
  %87 = vmatpush2.msra.mxu0 0.0
  %88 = vmatprep.subr.mxu0 0.0
  %89 = vmatpush2.msra.mxu0 0.0
  %90 = vmatprep.subr.mxu0 0.0
  %91 = vmatpush2.msra.mxu0 0.0
  %92 = vmatprep.subr.mxu0 0.0
  %93 = vmatpush2.msra.mxu0 0.0
  %94 = vmatprep.subr.mxu0 0.0
  %95 = vmatpush2.msra.mxu0 0.0
  %96 = vmatprep.subr.mxu0 0.0
  %97 = vmatpush2.msra.mxu0 0.0
  %98 = vmatprep.mubr.f32.mxu0 0.0
  %99 = vmatmul.mubr.f32.gmra.mxu0 %v29
  %v100 = vpop.f32.mrf.mxu0
  %v101 = vadd.f32 0.0, %v100
  %v102 = vpop.f32.mrf.mxu0
  %103 = vmatprep.mubr.f32.mxu0 0.0
  %104 = vmatmul.mubr.f32.gmra.mxu0 %v32
  %v105 = vpop.f32.mrf.mxu0
  %v106 = vadd.f32 0.0, %v105
  %v107 = vpop.f32.mrf.mxu0
  %108 = vdwg.mxu0
  %s109 = smul.u32 0, 8
  %v110 = vlaneseq
  %v111 = vshrl.u32 %v110, 7
  %v112 = vstv %s109
  %v113 = vadd.s32 %v112, %v111
  %vm114 = vcmp.lt.s32.totalorder %v113, 8
  %v115 = vld [vmem:[%s2] sm:$0xff]
  %v116 = vld [vmem:[%s2 + $0x8] sm:$0xff]
  %v117 = vld [vmem:[#allocation2] sm:$0x3]
  %v118 = vmul.f32 %v101, %v115
  %v119 = vmul.f32 %v106, %v116
  %v120 = vsel %vm114, %v118, 0.0
  %v121 = vsel %vm114, %v119, 0.0
  %vm122 = vcmask 7168
  %v123 = vsel %vm122, %v120, 0.0
  %v124 = vrot.slane %v123, 4
  %v125 = vadd.f32 %v123, %v124
  %v126 = vrot.slane %v125, 2
  %v127 = vadd.f32 %v125, %v126
  %v128 = vrot.slane %v127, 1
  %v129 = vadd.f32 %v127, %v128
  %v130 = vsel %vm122, %v121, 0.0
  %v131 = vrot.slane %v130, 4
  %v132 = vadd.f32 %v130, %v131
  %v133 = vrot.slane %v132, 2
  %v134 = vadd.f32 %v132, %v133
  %v135 = vrot.slane %v134, 1
  %v136 = vadd.f32 %v134, %v135
  %vm139 = vcmask 1041409
  %v140 = vsel %vm139, %v136, %v129
  %v142 = vadd.f32 %v117, %v140
  %vm143 = vcmask 1024
  %144 = vst.msk [vmem:[#allocation2] sm:$0x3] %vm143, %v142
  %v145 = vld [vmem:[#allocation3] sm:$0x3]
  %v146 = vsel %vm114, %v115, 0.0
  %v147 = vsel %vm114, %v116, 0.0
  %v148 = vsel %vm122, %v146, 0.0
  %v149 = vrot.slane %v148, 4
  %v150 = vadd.f32 %v148, %v149
  %v151 = vrot.slane %v150, 2
  %v152 = vadd.f32 %v150, %v151
  %v153 = vrot.slane %v152, 1
  %v154 = vadd.f32 %v152, %v153
  %v155 = vsel %vm122, %v147, 0.0
  %v156 = vrot.slane %v155, 4
  %v157 = vadd.f32 %v155, %v156
  %v158 = vrot.slane %v157, 2
  %v159 = vadd.f32 %v157, %v158
  %v160 = vrot.slane %v159, 1
  %v161 = vadd.f32 %v159, %v160
  %v164 = vsel %vm139, %v161, %v154
  %v166 = vadd.f32 %v145, %v164
  %167 = vst.msk [vmem:[#allocation3] sm:$0x3] %vm143, %v166
  // Predicated region
  $region18: #{tpu_custom_call.1} parent=0 // pred_check
    %p168 = pneg %p14
  $region19: #{tpu_custom_call.1} parent=0 // pred_check_branch
    %170 = sbr.rel (%p168) target = $region21
  $region20: #{tpu_custom_call.1} parent=0 // pred_region
    %v171 = vld [vmem:[#allocation3] sm:$0x3]
    %v172 = vmax.f32 %v171, 1e-12
    %v173 = vld [vmem:[#allocation2] sm:$0x3]
    %v174 = vrcp.pop %v172
    %v175 = vmul.f32 %v173, %v174
    %176 = vst.msk [vmem:[%s3] sm:$0x3] %vm143, %v175
  $region21: #{tpu_custom_call.1} parent=0 // pred_fallthru
    _
  // Predicated region
  $region22: #{tpu_custom_call.1} parent=0 // pred_check
    _
  $region23: #{tpu_custom_call.1} parent=0 // pred_check_branch
    %178 = sbr.rel (0) target = $region25
  $region24: #{tpu_custom_call.1} parent=0 // pred_region
    _
  $region25: #{tpu_custom_call.1} parent=0 // pred_fallthru
    _
  // Predicated region
  $region26: #{tpu_custom_call.1} parent=0 // pred_check
    _
  $region27: #{tpu_custom_call.1} parent=0 // pred_check_branch
    %180 = sbr.rel (0) target = $region29
  $region28: #{tpu_custom_call.1} parent=0 // pred_region
    _
  $region29: #{tpu_custom_call.1} parent=0 // pred_fallthru
    _

</llo_original>
